<compile_context>
chip_gen: v6e
topology: v6e:2x2x1
jax: 0.10.0
libtpu: 0.0.40
codegen_flags: <defaults>
</compile_context>

<pallas_src>
import functools

import jax
import jax.numpy as jnp
from jax.experimental import pallas as pl
from jax.experimental.pallas import tpu as pltpu


def _tile(dim, target, align):
    """Largest multiple of `align` that divides `dim` and is <= target, else dim.

    Fallback-to-full-dim is always legal (block == full array dim satisfies the
    (8,128)/(16,128) tiling rule); for very large non-friendly dims it may cost
    extra VMEM, but stays correct.
    """
    if dim <= target:
        return dim
    t = (target // align) * align
    while t >= align:
        if dim % t == 0:
            return t
        t -= align
    return dim


# -----------------------------------------------------------------------------
# Kernel A: up-projection  h = [hr | hi] = [xr | xi] @ [[w1r, w1i], [-w1i, w1r]]
#   single wide-K bf16 matmul, f32 VMEM accumulator, bf16 output.
# -----------------------------------------------------------------------------
def _complex_ffn_w1_kernel(xs_ref, w1_ref, h_ref, acc_ref):
    k = pl.program_id(2)

    @pl.when(k == 0)
    def _():
        acc_ref[...] = jnp.zeros_like(acc_ref)

    acc_ref[...] += jnp.dot(xs_ref[...], w1_ref[...],
                            preferred_element_type=jnp.float32)

    @pl.when(k == pl.num_programs(2) - 1)
    def _():
        h_ref[...] = acc_ref[...].astype(h_ref.dtype)


def _ffn_w1(xs, w1s, *, tm, tn, tk):
    M, K = xs.shape
    N = w1s.shape[1]
    grid = (M // tm, N // tn, K // tk)
    return pl.pallas_call(
        _complex_ffn_w1_kernel,
        out_shape=jax.ShapeDtypeStruct((M, N), jnp.bfloat16),
        grid=grid,
        in_specs=[
            pl.BlockSpec((tm, tk), lambda i, j, k: (i, k)),
            pl.BlockSpec((tk, tn), lambda i, j, k: (k, j)),
        ],
        out_specs=pl.BlockSpec((tm, tn), lambda i, j, k: (i, j)),
        scratch_shapes=[pltpu.VMEM((tm, tn), jnp.float32)],
        compiler_params=pltpu.CompilerParams(
            dimension_semantics=("parallel", "parallel", "arbitrary"),
            vmem_limit_bytes=48 * 1024 * 1024),
    )(xs, w1s)


# -----------------------------------------------------------------------------
# Kernel B: down-projection + dropout(identity) + residual + complex LayerNorm
#   zr = [hr|hi] @ [[w2r],[-w2i]]     zi = [hr|hi] @ [[w2i],[w2r]]
#   accumulated directly into the f32 output refs (block index constant over k);
#   the residual-add + LayerNorm epilogue runs on the last K step only.
# -----------------------------------------------------------------------------
def _complex_ffn_w2_ln_kernel(h_ref, w2a_ref, w2b_ref, rr_ref, ri_ref,
                              gr_ref, gi_ref, br_ref, bi_ref,
                              or_ref, oi_ref, *, eps):
    k = pl.program_id(1)

    @pl.when(k == 0)
    def _():
        or_ref[...] = jnp.zeros_like(or_ref)
        oi_ref[...] = jnp.zeros_like(oi_ref)

    h = h_ref[...]
    or_ref[...] += jnp.dot(h, w2a_ref[...], preferred_element_type=jnp.float32)
    oi_ref[...] += jnp.dot(h, w2b_ref[...], preferred_element_type=jnp.float32)

    @pl.when(k == pl.num_programs(1) - 1)
    def _():
        # TODO(synk): ComplexDropout treated as identity (eval mode).
        def ln(x, gg, bb):
            mu = jnp.mean(x, axis=-1, keepdims=True)
            var = jnp.mean((x - mu) ** 2, axis=-1, keepdims=True)
            return (x - mu) * jax.lax.rsqrt(var + eps) * gg + bb

        zr = or_ref[...] + rr_ref[...]
        zi = oi_ref[...] + ri_ref[...]
        or_ref[...] = ln(zr, gr_ref[...], br_ref[...]).astype(or_ref.dtype)
        oi_ref[...] = ln(zi, gi_ref[...], bi_ref[...]).astype(oi_ref.dtype)


def _ffn_w2_res_ln(h, w2a, w2b, rr, ri, gr, gi, br, bi, *, eps, tm, tk):
    M, K = h.shape
    d_in = w2a.shape[1]
    grid = (M // tm, K // tk)
    return pl.pallas_call(
        functools.partial(_complex_ffn_w2_ln_kernel, eps=eps),
        out_shape=(jax.ShapeDtypeStruct((M, d_in), jnp.float32),
                   jax.ShapeDtypeStruct((M, d_in), jnp.float32)),
        grid=grid,
        in_specs=[
            pl.BlockSpec((tm, tk), lambda i, k: (i, k)),
            pl.BlockSpec((tk, d_in), lambda i, k: (k, 0)),
            pl.BlockSpec((tk, d_in), lambda i, k: (k, 0)),
            pl.BlockSpec((tm, d_in), lambda i, k: (i, 0)),
            pl.BlockSpec((tm, d_in), lambda i, k: (i, 0)),
            pl.BlockSpec((1, d_in), lambda i, k: (0, 0)),
            pl.BlockSpec((1, d_in), lambda i, k: (0, 0)),
            pl.BlockSpec((1, d_in), lambda i, k: (0, 0)),
            pl.BlockSpec((1, d_in), lambda i, k: (0, 0)),
        ],
        out_specs=(pl.BlockSpec((tm, d_in), lambda i, k: (i, 0)),
                   pl.BlockSpec((tm, d_in), lambda i, k: (i, 0))),
        compiler_params=pltpu.CompilerParams(
            dimension_semantics=("parallel", "arbitrary"),
            vmem_limit_bytes=48 * 1024 * 1024),
    )(h, w2a, w2b, rr, ri, gr, gi, br, bi)


# -----------------------------------------------------------------------------
# One-time parameter preparation (hoisted out of the per-call forward path).
# -----------------------------------------------------------------------------
def prepare_complex_ffn_params(params):
    w1r, w1i = params["w1_r"], params["w1_i"]
    w2r, w2i = params["w2_r"], params["w2_i"]
    w1s = jnp.concatenate(
        [jnp.concatenate([w1r, w1i], axis=1),
         jnp.concatenate([-w1i, w1r], axis=1)], axis=0).astype(jnp.bfloat16)
    w2a = jnp.concatenate([w2r, -w2i], axis=0).astype(jnp.bfloat16)
    w2b = jnp.concatenate([w2i, w2r], axis=0).astype(jnp.bfloat16)
    return {
        "w1s": w1s,                                     # (2*d_in, 2*d_hid) bf16
        "w2a": w2a,                                     # (2*d_hid, d_in)   bf16
        "w2b": w2b,                                     # (2*d_hid, d_in)   bf16
        "g_r": params["ln_g_r"].astype(jnp.float32),
        "g_i": params["ln_g_i"].astype(jnp.float32),
        "b_r": params["ln_b_r"].astype(jnp.float32),
        "b_i": params["ln_b_i"].astype(jnp.float32),
    }


# -----------------------------------------------------------------------------
# Full module forward
# -----------------------------------------------------------------------------
def complex_positionwise_ffn_forward(prep, x, *, eps=1e-6,
                                     tm=256, tn=256, tk=256):
    """prep = prepare_complex_ffn_params(params); x = (real, imag) [B,L,d_in] f32."""
    xr, xi = x
    B, L, d_in = xr.shape
    M = B * L
    n_hid2 = prep["w1s"].shape[1]       # 2 * d_hid
    k_in2 = prep["w1s"].shape[0]        # 2 * d_in

    xr2 = xr.reshape(M, d_in).astype(jnp.float32)   # residuals stay f32
    xi2 = xi.reshape(M, d_in).astype(jnp.float32)
    xs = jnp.concatenate([xr2, xi2], axis=1).astype(jnp.bfloat16)   # (M, 2*d_in)

    # Tile sizes (bf16 second-to-last dims aligned to 16, lanes to 128,
    # falling back to the full dim which is always legal).
    tm1 = _tile(M, tm, 16)
    tn1 = _tile(n_hid2, tn, 128)
    tk1 = _tile(k_in2, tk, 128)
    tm2 = _tile(M, tm, 16)
    tk2 = _tile(n_hid2, tk, 128)

    # h = [hr | hi] : (M, 2*d_hid) bf16
    h = _ffn_w1(xs, prep["w1s"], tm=tm1, tn=tn1, tk=tk1)

    # z = w_2(h) ; z += residual ; complex LayerNorm  (fused epilogue)
    o_r, o_i = _ffn_w2_res_ln(h, prep["w2a"], prep["w2b"], xr2, xi2,
                              prep["g_r"], prep["g_i"], prep["b_r"], prep["b_i"],
                              eps=eps, tm=tm2, tk=tk2)
    return o_r.reshape(B, L, d_in), o_i.reshape(B, L, d_in)


# -----------------------------------------------------------------------------
# Pure-JAX reference (real arithmetic, f32) for a sanity check
# -----------------------------------------------------------------------------
def _reference(params, xr, xi, eps=1e-6):
    B, L, d_in = xr.shape
    xr2 = xr.reshape(-1, d_in)
    xi2 = xi.reshape(-1, d_in)
    w1r, w1i = params["w1_r"], params["w1_i"]
    w2r, w2i = params["w2_r"], params["w2_i"]

    hr = xr2 @ w1r - xi2 @ w1i
    hi = xr2 @ w1i + xi2 @ w1r
    zr = hr @ w2r - hi @ w2i + xr2
    zi = hr @ w2i + hi @ w2r + xi2

    def ln(t, gg, bb):
        mu = jnp.mean(t, -1, keepdims=True)
        var = jnp.mean((t - mu) ** 2, -1, keepdims=True)
        return (t - mu) * jax.lax.rsqrt(var + eps) * gg + bb

    out_r = ln(zr, params["ln_g_r"], params["ln_b_r"]).reshape(B, L, d_in)
    out_i = ln(zi, params["ln_g_i"], params["ln_b_i"]).reshape(B, L, d_in)
    return out_r, out_i


if __name__ == "__main__":
    # Small, TPU-aligned example shapes (exercise multi-block M/N grids and
    # multi-step K accumulation + the fused residual/LN epilogue).
    B, L, d_in, d_hid = 4, 64, 128, 256

    key = jax.random.PRNGKey(0)
    ks = jax.random.split(key, 10)

    def snap(a):
        # Make values exactly bf16-representable so the bf16 MXU operands do
        # not affect the correctness comparison beyond accumulation rounding.
        return a.astype(jnp.bfloat16).astype(jnp.float32)

    s1 = 1.0 / (d_in ** 0.5)
    s2 = 1.0 / (d_hid ** 0.5)
    params = {
        "w1_r": snap(jax.random.normal(ks[0], (d_in, d_hid), jnp.float32) * s1),
        "w1_i": snap(jax.random.normal(ks[1], (d_in, d_hid), jnp.float32) * s1),
        "w2_r": snap(jax.random.normal(ks[2], (d_hid, d_in), jnp.float32) * s2),
        "w2_i": snap(jax.random.normal(ks[3], (d_hid, d_in), jnp.float32) * s2),
        "ln_g_r": snap(1.0 + 0.1 * jax.random.normal(ks[4], (1, d_in), jnp.float32)),
        "ln_g_i": snap(1.0 + 0.1 * jax.random.normal(ks[5], (1, d_in), jnp.float32)),
        "ln_b_r": snap(0.1 * jax.random.normal(ks[6], (1, d_in), jnp.float32)),
        "ln_b_i": snap(0.1 * jax.random.normal(ks[7], (1, d_in), jnp.float32)),
    }
    xr = snap(jax.random.normal(ks[8], (B, L, d_in), jnp.float32))
    xi = snap(jax.random.normal(ks[9], (B, L, d_in), jnp.float32))

    prep = prepare_complex_ffn_params(params)   # one-time weight stacking/cast

    out_r, out_i = complex_positionwise_ffn_forward(
        prep, (xr, xi), tm=128, tn=128, tk=128)
    jax.block_until_ready((out_r, out_i))

    ref_r, ref_i = _reference(params, xr, xi)
    assert out_r.shape == (B, L, d_in) and out_i.shape == (B, L, d_in)
    assert jnp.allclose(out_r, ref_r, rtol=2e-2, atol=2e-2)
    assert jnp.allclose(out_i, ref_i, rtol=2e-2, atol=2e-2)

    print("KERNEL_OK")
</pallas_src>

<mosaic_0001>
module attributes {stable_mosaic.version = 11 : i64} {
  func.func @_complex_ffn_w1_kernel(%arg0: i32, %arg1: i32, %arg2: i32, %arg3: memref<128x128xbf16, #tpu.memory_space<vmem>>, %arg4: memref<128x128xbf16, #tpu.memory_space<vmem>>, %arg5: memref<128x128xbf16, #tpu.memory_space<vmem>>, %arg6: memref<128x128xf32, #tpu.memory_space<vmem>>) attributes {dimension_semantics = [#tpu.dimension_semantics<parallel>, #tpu.dimension_semantics<parallel>, #tpu.dimension_semantics<arbitrary>], iteration_bounds = array<i64: 2, 4, 2>, scalar_prefetch = 0 : i64, scratch_operands = 1 : i64, tpu.core_type = #tpu.core_type<tc>, window_params = [{transform_indices = @transform_0, window_bounds = array<i64: 128, 128>}, {transform_indices = @transform_1, window_bounds = array<i64: 128, 128>}, {transform_indices = @transform_2, window_bounds = array<i64: 128, 128>}]} {
    %c0_i32 = arith.constant 0 : i32
    %0 = arith.cmpi eq, %arg2, %c0_i32 : i32
    %1 = arith.extui %0 : i1 to i32
    %c0_i32_0 = arith.constant 0 : i32
    %2 = arith.cmpi ne, %1, %c0_i32_0 : i32
    scf.if %2 {
      %cst_9 = arith.constant 0.000000e+00 : f32
      %12 = vector.broadcast %cst_9 : f32 to vector<128x128xf32>
      %c0_10 = arith.constant 0 : index
      %c0_11 = arith.constant 0 : index
      %13 = vector.load %arg6[%c0_10, %c0_11] : memref<128x128xf32, #tpu.memory_space<vmem>>, vector<128x128xf32>
      tpu.vector_store %arg6[%c0_10, %c0_11], %12 {strides = array<i32>} : memref<128x128xf32, #tpu.memory_space<vmem>>, vector<128x128xf32>,
    } else {
    }
    %c0 = arith.constant 0 : index
    %c0_1 = arith.constant 0 : index
    %3 = vector.load %arg6[%c0, %c0_1] : memref<128x128xf32, #tpu.memory_space<vmem>>, vector<128x128xf32>
    %c0_2 = arith.constant 0 : index
    %c0_3 = arith.constant 0 : index
    %4 = vector.load %arg3[%c0_2, %c0_3] : memref<128x128xbf16, #tpu.memory_space<vmem>>, vector<128x128xbf16>
    %c0_4 = arith.constant 0 : index
    %c0_5 = arith.constant 0 : index
    %5 = vector.load %arg4[%c0_4, %c0_5] : memref<128x128xbf16, #tpu.memory_space<vmem>>, vector<128x128xbf16>
    %cst = arith.constant dense<0.000000e+00> : vector<128x128xf32>
    %6 = tpu.matmul %4, %5, %cst {dimension_numbers = #tpu.dot_dimension_numbers<[1], [0], [0], [1], [0, 0, 1, 1], [], []>} : vector<128x128xbf16>, vector<128x128xbf16>, vector<128x128xf32> -> vector<128x128xf32>
    %7 = arith.addf %3, %6 : vector<128x128xf32>
    %c0_6 = arith.constant 0 : index
    %c0_7 = arith.constant 0 : index
    %8 = vector.load %arg6[%c0_6, %c0_7] : memref<128x128xf32, #tpu.memory_space<vmem>>, vector<128x128xf32>
    tpu.vector_store %arg6[%c0_6, %c0_7], %7 {strides = array<i32>} : memref<128x128xf32, #tpu.memory_space<vmem>>, vector<128x128xf32>,
    %c1_i32 = arith.constant 1 : i32
    %9 = arith.cmpi eq, %arg2, %c1_i32 : i32
    %10 = arith.extui %9 : i1 to i32
    %c0_i32_8 = arith.constant 0 : i32
    %11 = arith.cmpi ne, %10, %c0_i32_8 : i32
    scf.if %11 {
      %c0_9 = arith.constant 0 : index
      %c0_10 = arith.constant 0 : index
      %12 = vector.load %arg6[%c0_9, %c0_10] : memref<128x128xf32, #tpu.memory_space<vmem>>, vector<128x128xf32>
      %13 = arith.truncf %12 : vector<128x128xf32> to vector<128x128xbf16>
      %c0_11 = arith.constant 0 : index
      %c0_12 = arith.constant 0 : index
      %14 = vector.load %arg5[%c0_11, %c0_12] : memref<128x128xbf16, #tpu.memory_space<vmem>>, vector<128x128xbf16>
      tpu.vector_store %arg5[%c0_11, %c0_12], %13 {strides = array<i32>} : memref<128x128xbf16, #tpu.memory_space<vmem>>, vector<128x128xbf16>,
    } else {
    }
    return
  }
  func.func @transform_0(%arg0: i32, %arg1: i32, %arg2: i32) -> (i32, i32) {
    %c0_i32 = arith.constant 0 : i32
    return %arg0, %arg2 : i32, i32
  }
  func.func @transform_1(%arg0: i32, %arg1: i32, %arg2: i32) -> (i32, i32) {
    %c0_i32 = arith.constant 0 : i32
    return %arg2, %arg1 : i32, i32
  }
  func.func @transform_2(%arg0: i32, %arg1: i32, %arg2: i32) -> (i32, i32) {
    %c0_i32 = arith.constant 0 : i32
    return %arg0, %arg1 : i32, i32
  }
}

</mosaic_0001>

<llo_original>
// kernel: tpu_custom_call.1
$region0: #{tpu_custom_call.1}
  #allocation0 [shape = 'u32[]', space=smem, size = 0x4, offset = 0x4, fixed_abs, tag = 'smem constant byte address 0x4 - core index']
  #allocation1 [shape = 'u32[144,128]{1,0:T(1,128)}', space=vmem, size = 0x12000, scoped, tag = 'internal scratch']
  #allocation2 [shape = 'f32[128,128]{1,0:T(8,128)}', space=vmem, size = 0x10000, scoped, tag = 'scratch operand']
  %s0 = inlined_call_operand.hbm [shape: bf16[256,256], index: 0, kind: input, shape index: {}]
  %s1 = inlined_call_operand.hbm [shape: bf16[256,512], index: 1, kind: input, shape index: {}]
  %s2 = inlined_call_operand.hbm [shape: bf16[256,512], index: 2, kind: output, shape index: {}]
  %s3 = sld [smem:[#allocation0]]
  $region57: #{tpu_custom_call.1} parent=0
    _
  %s5 = ssub.s32 1, %s3
  %s6 = scalar_select 0, %s5, %s3
  $region1: #{tpu_custom_call.1} parent=0
    #allocation3 [shape = 'u8[65536]{0}', space=vmem, size = 0x10000, scoped, tag = 'input window, operand 0']
    #allocation4 [shape = 's32[2]{0}', space=sflag, size = 0x8, scoped, tag = 'scoped memory for tpu_custom_call.1']
    #allocation5 [shape = 's32[2]{0}', space=sflag, size = 0x8, scoped, tag = 'scoped memory for tpu_custom_call.1']
    #allocation6 [shape = 'u8[65536]{0}', space=vmem, size = 0x10000, scoped, tag = 'input window, operand 1']
    #allocation7 [shape = 's32[2]{0}', space=sflag, size = 0x8, scoped, tag = 'scoped memory for tpu_custom_call.1']
    #allocation8 [shape = 'u8[65536]{0}', space=vmem, size = 0x10000, scoped, tag = 'output window, operand 0']
    %7 = vsyncpa [#allocation4], 0
    %s8 = scalar_lea.sflag [#allocation4], 1
    %9 = vsyncpa %s8, 0
    %10 = vsyncpa [#allocation7], 0
    %s11 = scalar_lea.sflag [#allocation7], 1
    %12 = vsyncpa %s11, 0
    %13 = vsyncpa [#allocation5], 0
    %s14 = scalar_lea.sflag [#allocation5], 1
    %15 = vsyncpa %s14, 0
    loop: start=0, step=1, limit=18
    $region2: #{tpu_custom_call.1} parent=1 // loop_pre_header
      _
    $region3: #{tpu_custom_call.1} parent=1 // loop_header
      %s17 = sphi 0, %s21
      %p18 = scmp.ge.s32.totalorder %s17, 18
      %s24 = sphi 0, %s43
      %s25 = sphi 0, %s39
      %s26 = sphi 0, %s35
      %s27 = sphi 0, %s24
      %s28 = sphi 0, %s25
      %s29 = sphi 0, %s26
      %s30 = sphi 0, %s27
      %s31 = sphi 0, %s28
      %s32 = sphi 0, %s29
      %s48 = sphi 0, %s50
      %s51 = sphi 0, %s48
      %s52 = sphi 0, %s51
      %s68 = sphi 0, %s52
      %s76 = sphi 0, %s78
      %s79 = sphi 0, %s76
      %s80 = sphi 0, %s79
      %s96 = sphi 0, %s80
      %s104 = sphi 0, %s106
      %s107 = sphi 0, %s104
      %s108 = sphi 0, %s107
      %s124 = sphi 0, %s108
    $region4: #{tpu_custom_call.1} parent=1 // loop_header_branch
      %20 = sbr.rel (%p18) target = $region8
    $region5: #{tpu_custom_call.1} parent=1 // loop_body
      %s22 = ssub.s32 %s17, 1
      %s23 = ssub.s32 %s17, 2
      %s33 = sadd.s32 1, %s26
      %p34 = scmp.ge.s32.totalorder %s33, 2
      %s35 = scalar_select %p34, 0, %s33
      %s36 = sadd.s32 1, %s25
      %s37 = scalar_select %p34, %s36, %s25
      %p38 = scmp.ge.s32.totalorder %s37, 4
      %s39 = scalar_select %p38, 0, %s37
      %s40 = sadd.s32 1, %s24
      %s41 = scalar_select %p38, %s40, %s24
      %p42 = scmp.ge.s32.totalorder %s41, 2
      %s43 = scalar_select %p42, 0, %s41
      %s44 = ssub.s32 %s24, %s43
      %s45 = ssub.s32 %s26, %s35
      %s46 = sor.u32 %s44, %s45
      %p47 = scmp.eq.s32.totalorder %s46, 0
      %s49 = sadd.s32 %s48, 1
      %s50 = scalar_select %p47, %s48, %s49
      %p53 = pneg %p47
      %p54 = scmp.eq.s32.totalorder %s17, 15
      %p55 = por %p53, %p54
      %p56 = scmp.ne.s32.totalorder %s48, %s51
      %p57 = scmp.eq.s32.totalorder %s17, 0
      %p58 = por %p56, %p57
      %p59 = scmp.ne.s32.totalorder %s48, %s51
      %p60 = scmp.eq.s32.totalorder %s22, 15
      %p61 = por %p59, %p60
      %p62 = scmp.ne.s32.totalorder %s51, %s52
      %p63 = scmp.eq.s32.totalorder %s22, 0
      %p64 = por %p62, %p63
      %p65 = scmp.ne.s32.totalorder %s51, %s52
      %p66 = scmp.eq.s32.totalorder %s23, 15
      %p67 = por %p65, %p66
      %p69 = scmp.ne.s32.totalorder %s52, %s68
      %p70 = scmp.eq.s32.totalorder %s23, 0
      %p71 = por %p69, %p70
      %s72 = ssub.s32 %s26, %s35
      %s73 = ssub.s32 %s25, %s39
      %s74 = sor.u32 %s72, %s73
      %p75 = scmp.eq.s32.totalorder %s74, 0
      %s77 = sadd.s32 %s76, 1
      %s78 = scalar_select %p75, %s76, %s77
      %p81 = pneg %p75
      %p82 = scmp.eq.s32.totalorder %s17, 15
      %p83 = por %p81, %p82
      %p84 = scmp.ne.s32.totalorder %s76, %s79
      %p85 = scmp.eq.s32.totalorder %s17, 0
      %p86 = por %p84, %p85
      %p87 = scmp.ne.s32.totalorder %s76, %s79
      %p88 = scmp.eq.s32.totalorder %s22, 15
      %p89 = por %p87, %p88
      %p90 = scmp.ne.s32.totalorder %s79, %s80
      %p91 = scmp.eq.s32.totalorder %s22, 0
      %p92 = por %p90, %p91
      %p93 = scmp.ne.s32.totalorder %s79, %s80
      %p94 = scmp.eq.s32.totalorder %s23, 15
      %p95 = por %p93, %p94
      %p97 = scmp.ne.s32.totalorder %s80, %s96
      %p98 = scmp.eq.s32.totalorder %s23, 0
      %p99 = por %p97, %p98
      %s100 = ssub.s32 %s24, %s43
      %s101 = ssub.s32 %s25, %s39
      %s102 = sor.u32 %s100, %s101
      %p103 = scmp.eq.s32.totalorder %s102, 0
      %s105 = sadd.s32 %s104, 1
      %s106 = scalar_select %p103, %s104, %s105
      %p109 = pneg %p103
      %p110 = scmp.eq.s32.totalorder %s17, 15
      %p111 = por %p109, %p110
      %p112 = scmp.ne.s32.totalorder %s104, %s107
      %p113 = scmp.eq.s32.totalorder %s17, 0
      %p114 = por %p112, %p113
      %p115 = scmp.ne.s32.totalorder %s104, %s107
      %p116 = scmp.eq.s32.totalorder %s22, 15
      %p117 = por %p115, %p116
      %p118 = scmp.ne.s32.totalorder %s107, %s108
      %p119 = scmp.eq.s32.totalorder %s22, 0
      %p120 = por %p118, %p119
      %p121 = scmp.ne.s32.totalorder %s107, %s108
      %p122 = scmp.eq.s32.totalorder %s23, 15
      %p123 = por %p121, %p122
      %p125 = scmp.ne.s32.totalorder %s108, %s124
      %p126 = scmp.eq.s32.totalorder %s23, 0
      %p127 = por %p125, %p126
      %p128 = scmp.le.s32.totalorder 1, %s17
      %p129 = scmp.lt.s32.totalorder %s17, 17
      %p130 = pnand %p128, %p129
      %p131 = pneg %p130
      // Predicated region
      $region9: #{tpu_custom_call.1} parent=5 // pred_check
        _
      $region10: #{tpu_custom_call.1} parent=5 // pred_check_branch
        %133 = sbr.rel (%p130) target = $region12
      $region11: #{tpu_custom_call.1} parent=5 // pred_region
        %s134 = ssub.s32 %s17, 1
      $region12: #{tpu_custom_call.1} parent=5 // pred_fallthru
        _
      %p135 = scmp.lt.s32.totalorder %s17, 16
      // Predicated region
      $region13: #{tpu_custom_call.1} parent=5 // pred_check
        %p136 = pneg %p135
      $region14: #{tpu_custom_call.1} parent=5 // pred_check_branch
        %138 = sbr.rel (%p136) target = $region16
      $region15: #{tpu_custom_call.1} parent=5 // pred_region
        // Predicated region
        $region17: #{tpu_custom_call.1} parent=15 // pred_check
          %p139 = pneg %p58
        $region18: #{tpu_custom_call.1} parent=15 // pred_check_branch
          %141 = sbr.rel (%p139) target = $region20
        $region19: #{tpu_custom_call.1} parent=15 // pred_region
          %s142 = sand.u32 %s48, 1
          %s143 = scalar_lea.sflag [#allocation4], %s142
          %s144 = sand.u32 %s48, 1
          %s145 = smul.addr %s144, 64
          %s146 = scalar_lea.vmem [#allocation3], %s145
          %s147 = smul.u32 16, %s24
          %s149 = ssub.s32 1024, 1024
          %150 = vsyncadd %s143, %s149
          %s151 = smul.addr %s147, 2
          %s152 = sadd.s32 %s26, %s151
          %s153 = smul.addr %s152, 64
          %s154 = scalar_lea.hbm %s0, %s153
          %s155 = sshll.u32 %s146, 4
          %s156 = int_to_ptr.vmem [resolvable:$true] %s155
          %161 = dma.hbm_to_vmem [thread:$0]  %s154, 1024, %s156, %s143, 128, 64, 4
        $region20: #{tpu_custom_call.1} parent=15 // pred_fallthru
          _
        // Predicated region
        $region21: #{tpu_custom_call.1} parent=15 // pred_check
          %p162 = pneg %p86
        $region22: #{tpu_custom_call.1} parent=15 // pred_check_branch
          %164 = sbr.rel (%p162) target = $region24
        $region23: #{tpu_custom_call.1} parent=15 // pred_region
          %s165 = sand.u32 %s76, 1
          %s166 = scalar_lea.sflag [#allocation7], %s165
          %s167 = sand.u32 %s76, 1
          %s168 = smul.addr %s167, 64
          %s169 = scalar_lea.vmem [#allocation6], %s168
          %s170 = smul.u32 16, %s26
          %s172 = ssub.s32 1024, 1024
          %173 = vsyncadd %s166, %s172
          %s174 = smul.addr %s170, 4
          %s175 = sadd.s32 %s25, %s174
          %s176 = smul.addr %s175, 64
          %s177 = scalar_lea.hbm %s1, %s176
          %s178 = sshll.u32 %s169, 4
          %s179 = int_to_ptr.vmem [resolvable:$true] %s178
          %184 = dma.hbm_to_vmem [thread:$0]  %s177, 1024, %s179, %s166, 256, 64, 4
        $region24: #{tpu_custom_call.1} parent=15 // pred_fallthru
          _
      $region16: #{tpu_custom_call.1} parent=5 // pred_fallthru
        _
      %p185 = scmp.le.s32.totalorder 1, %s17
      %p186 = scmp.lt.s32.totalorder %s17, 17
      %p187 = pnand %p185, %p186
      %p188 = pneg %p187
      // Predicated region
      $region25: #{tpu_custom_call.1} parent=5 // pred_check
        _
      $region26: #{tpu_custom_call.1} parent=5 // pred_check_branch
        %190 = sbr.rel (%p187) target = $region28
      $region27: #{tpu_custom_call.1} parent=5 // pred_region
        %s191 = ssub.s32 %s17, 1
        %s192 = sand.u32 %s51, 1
        %s193 = scalar_lea.sflag [#allocation4], %s192
        %s194 = sand.u32 %s51, 1
        %s195 = smul.addr %s194, 64
        %s196 = scalar_lea.vmem [#allocation3], %s195
        // Predicated region
        $region29: #{tpu_custom_call.1} parent=27 // pred_check
          %p197 = pneg %p64
        $region30: #{tpu_custom_call.1} parent=27 // pred_check_branch
          %199 = sbr.rel (%p197) target = $region32
        $region31: #{tpu_custom_call.1} parent=27 // pred_region
          %200 = dma.done %s193, 1024
        $region32: #{tpu_custom_call.1} parent=27 // pred_fallthru
          _
        %s201 = sand.u32 %s79, 1
        %s202 = scalar_lea.sflag [#allocation7], %s201
        %s203 = sand.u32 %s79, 1
        %s204 = smul.addr %s203, 64
        %s205 = scalar_lea.vmem [#allocation6], %s204
        // Predicated region
        $region33: #{tpu_custom_call.1} parent=27 // pred_check
          %p206 = pneg %p92
        $region34: #{tpu_custom_call.1} parent=27 // pred_check_branch
          %208 = sbr.rel (%p206) target = $region36
        $region35: #{tpu_custom_call.1} parent=27 // pred_region
          %209 = dma.done %s202, 1024
        $region36: #{tpu_custom_call.1} parent=27 // pred_fallthru
          _
        %s210 = sand.u32 %s51, 1
        %s211 = scalar_lea.sflag [#allocation4], %s210
        %s212 = sand.u32 %s51, 1
        %s213 = smul.addr %s212, 64
        %s214 = scalar_lea.vmem [#allocation3], %s213
        %p215 = pneg %p64
        %p216 = pneg %p61
        %s217 = sand.u32 %s79, 1
        %s218 = scalar_lea.sflag [#allocation7], %s217
        %s219 = sand.u32 %s79, 1
        %s220 = smul.addr %s219, 64
        %s221 = scalar_lea.vmem [#allocation6], %s220
        %p222 = pneg %p92
        %p223 = pneg %p89
        %p224 = pneg %p120
        %p225 = pneg %p117
        %s226 = sand.u32 %s107, 1
        %s227 = scalar_lea.sflag [#allocation5], %s226
        %s228 = sand.u32 %s107, 1
        %s229 = smul.addr %s228, 64
        %s230 = scalar_lea.vmem [#allocation8], %s229
        %s231 = smul.u32 16, %s27
        %s232 = smul.u32 16, %s29
        %s233 = smul.u32 16, %s27
        %p235 = scmp.eq.s32.totalorder %s29, 0
        // Predicated region
        $region37: #{tpu_custom_call.1} parent=27 // pred_check
          %p236 = pneg %p235
        $region38: #{tpu_custom_call.1} parent=27 // pred_check_branch
          %238 = sbr.rel (%p236) target = $region40
        $region39: #{tpu_custom_call.1} parent=27 // pred_region
          %239 = vst [vmem:[#allocation2] sm:$0xff] 0.0
          %240 = vst [vmem:[#allocation2 + $0x8] sm:$0xff] 0.0
          %241 = vst [vmem:[#allocation2 + $0x10] sm:$0xff] 0.0
          %242 = vst [vmem:[#allocation2 + $0x18] sm:$0xff] 0.0
          %243 = vst [vmem:[#allocation2 + $0x20] sm:$0xff] 0.0
          %244 = vst [vmem:[#allocation2 + $0x28] sm:$0xff] 0.0
          %245 = vst [vmem:[#allocation2 + $0x30] sm:$0xff] 0.0
          %246 = vst [vmem:[#allocation2 + $0x38] sm:$0xff] 0.0
          %247 = vst [vmem:[#allocation2 + $0x40] sm:$0xff] 0.0
          %248 = vst [vmem:[#allocation2 + $0x48] sm:$0xff] 0.0
          %249 = vst [vmem:[#allocation2 + $0x50] sm:$0xff] 0.0
          %250 = vst [vmem:[#allocation2 + $0x58] sm:$0xff] 0.0
          %251 = vst [vmem:[#allocation2 + $0x60] sm:$0xff] 0.0
          %252 = vst [vmem:[#allocation2 + $0x68] sm:$0xff] 0.0
          %253 = vst [vmem:[#allocation2 + $0x70] sm:$0xff] 0.0
          %254 = vst [vmem:[#allocation2 + $0x78] sm:$0xff] 0.0
        $region40: #{tpu_custom_call.1} parent=27 // pred_fallthru
          _
        %v255 = vld [vmem:[#allocation2] sm:$0xff]
        %v256 = vld [vmem:[#allocation2 + $0x8] sm:$0xff]
        %v257 = vld [vmem:[#allocation2 + $0x10] sm:$0xff]
        %v258 = vld [vmem:[#allocation2 + $0x18] sm:$0xff]
        %v259 = vld [vmem:[#allocation2 + $0x20] sm:$0xff]
        %v260 = vld [vmem:[#allocation2 + $0x28] sm:$0xff]
        %v261 = vld [vmem:[#allocation2 + $0x30] sm:$0xff]
        %v262 = vld [vmem:[#allocation2 + $0x38] sm:$0xff]
        %v263 = vld [vmem:[#allocation2 + $0x40] sm:$0xff]
        %v264 = vld [vmem:[#allocation2 + $0x48] sm:$0xff]
        %v265 = vld [vmem:[#allocation2 + $0x50] sm:$0xff]
        %v266 = vld [vmem:[#allocation2 + $0x58] sm:$0xff]
        %v267 = vld [vmem:[#allocation2 + $0x60] sm:$0xff]
        %v268 = vld [vmem:[#allocation2 + $0x68] sm:$0xff]
        %v269 = vld [vmem:[#allocation2 + $0x70] sm:$0xff]
        %v270 = vld [vmem:[#allocation2 + $0x78] sm:$0xff]
        %v271 = vld [vmem:[%s196] sm:$0xf]
        %v272 = vld [vmem:[%s196 + $0x4] sm:$0xf]
        %v273 = vld [vmem:[%s196 + $0x8] sm:$0xf]
        %v274 = vld [vmem:[%s196 + $0xc] sm:$0xf]
        %v275 = vld [vmem:[%s196 + $0x10] sm:$0xf]
        %v276 = vld [vmem:[%s196 + $0x14] sm:$0xf]
        %v277 = vld [vmem:[%s196 + $0x18] sm:$0xf]
        %v278 = vld [vmem:[%s196 + $0x1c] sm:$0xf]
        %v279 = vld [vmem:[%s196 + $0x20] sm:$0xf]
        %v280 = vld [vmem:[%s196 + $0x24] sm:$0xf]
        %v281 = vld [vmem:[%s196 + $0x28] sm:$0xf]
        %v282 = vld [vmem:[%s196 + $0x2c] sm:$0xf]
        %v283 = vld [vmem:[%s196 + $0x30] sm:$0xf]
        %v284 = vld [vmem:[%s196 + $0x34] sm:$0xf]
        %v285 = vld [vmem:[%s196 + $0x38] sm:$0xf]
        %v286 = vld [vmem:[%s196 + $0x3c] sm:$0xf]
        %v287 = vld [vmem:[%s205] sm:$0xf]
        %v288 = vld [vmem:[%s205 + $0x4] sm:$0xf]
        %v289 = vld [vmem:[%s205 + $0x8] sm:$0xf]
        %v290 = vld [vmem:[%s205 + $0xc] sm:$0xf]
        %v291 = vld [vmem:[%s205 + $0x10] sm:$0xf]
        %v292 = vld [vmem:[%s205 + $0x14] sm:$0xf]
        %v293 = vld [vmem:[%s205 + $0x18] sm:$0xf]
        %v294 = vld [vmem:[%s205 + $0x1c] sm:$0xf]
        %v295 = vld [vmem:[%s205 + $0x20] sm:$0xf]
        %v296 = vld [vmem:[%s205 + $0x24] sm:$0xf]
        %v297 = vld [vmem:[%s205 + $0x28] sm:$0xf]
        %v298 = vld [vmem:[%s205 + $0x2c] sm:$0xf]
        %v299 = vld [vmem:[%s205 + $0x30] sm:$0xf]
        %v300 = vld [vmem:[%s205 + $0x34] sm:$0xf]
        %v301 = vld [vmem:[%s205 + $0x38] sm:$0xf]
        %v302 = vld [vmem:[%s205 + $0x3c] sm:$0xf]
        %v319 = vunpack.c.l.b16 %v271
        %v320 = vunpack.c.l.b16 %v272
        %v321 = vunpack.c.l.b16 %v273
        %v322 = vunpack.c.l.b16 %v274
        %v323 = vunpack.c.l.b16 %v275
        %v324 = vunpack.c.l.b16 %v276
        %v325 = vunpack.c.l.b16 %v277
        %v326 = vunpack.c.l.b16 %v278
        %v327 = vunpack.c.l.b16 %v279
        %v328 = vunpack.c.l.b16 %v280
        %v329 = vunpack.c.l.b16 %v281
        %v330 = vunpack.c.l.b16 %v282
        %v331 = vunpack.c.l.b16 %v283
        %v332 = vunpack.c.l.b16 %v284
        %v333 = vunpack.c.l.b16 %v285
        %v334 = vunpack.c.l.b16 %v286
        %v335 = vpack.c.b16 %v320, %v319
        %v336 = vpack.c.b16 %v322, %v321
        %v337 = vpack.c.b16 %v324, %v323
        %v338 = vpack.c.b16 %v326, %v325
        %v339 = vpack.c.b16 %v328, %v327
        %v340 = vpack.c.b16 %v330, %v329
        %v341 = vpack.c.b16 %v332, %v331
        %v342 = vpack.c.b16 %v334, %v333
        %v367 = vunpack.c.l.b16 %v287
        %v368 = vunpack.c.l.b16 %v288
        %v369 = vunpack.c.l.b16 %v289
        %v370 = vunpack.c.l.b16 %v290
        %v371 = vunpack.c.l.b16 %v291
        %v372 = vunpack.c.l.b16 %v292
        %v373 = vunpack.c.l.b16 %v293
        %v374 = vunpack.c.l.b16 %v294
        %v375 = vunpack.c.l.b16 %v295
        %v376 = vunpack.c.l.b16 %v296
        %v377 = vunpack.c.l.b16 %v297
        %v378 = vunpack.c.l.b16 %v298
        %v379 = vunpack.c.l.b16 %v299
        %v380 = vunpack.c.l.b16 %v300
        %v381 = vunpack.c.l.b16 %v301
        %v382 = vunpack.c.l.b16 %v302
        %v383 = vpack.c.b16 %v368, %v367
        %v384 = vpack.c.b16 %v370, %v369
        %v385 = vpack.c.b16 %v372, %v371
        %v386 = vpack.c.b16 %v374, %v373
        %v387 = vpack.c.b16 %v376, %v375
        %v388 = vpack.c.b16 %v378, %v377
        %v389 = vpack.c.b16 %v380, %v379
        %v390 = vpack.c.b16 %v382, %v381
        %399 = vmatprep.subr.bf16.mxu0 0
        %400 = vmatpush1.bf16.msra.mxu0 %v390
        %401 = vmatprep.subr.bf16.mxu0 0
        %402 = vmatpush1.bf16.msra.mxu0 %v389
        %403 = vmatprep.subr.bf16.mxu0 0
        %404 = vmatpush1.bf16.msra.mxu0 %v388
        %405 = vmatprep.subr.bf16.mxu0 0
        %406 = vmatpush1.bf16.msra.mxu0 %v387
        %407 = vmatprep.subr.bf16.mxu0 0
        %408 = vmatpush1.bf16.msra.mxu0 %v386
        %409 = vmatprep.subr.bf16.mxu0 0
        %410 = vmatpush1.bf16.msra.mxu0 %v385
        %411 = vmatprep.subr.bf16.mxu0 0
        %412 = vmatpush1.bf16.msra.mxu0 %v384
        %413 = vmatprep.subr.bf16.mxu0 0
        %414 = vmatpush1.bf16.msra.mxu0 %v383
        %415 = vmatprep.subr.bf16.mxu0 0
        %416 = vmatpush2.bf16.msra.mxu0 0
        %417 = vmatprep.subr.bf16.mxu0 0
        %418 = vmatpush2.bf16.msra.mxu0 0
        %419 = vmatprep.subr.bf16.mxu0 0
        %420 = vmatpush2.bf16.msra.mxu0 0
        %421 = vmatprep.subr.bf16.mxu0 0
        %422 = vmatpush2.bf16.msra.mxu0 0
        %423 = vmatprep.subr.bf16.mxu0 0
        %424 = vmatpush2.bf16.msra.mxu0 0
        %425 = vmatprep.subr.bf16.mxu0 0
        %426 = vmatpush2.bf16.msra.mxu0 0
        %427 = vmatprep.subr.bf16.mxu0 0
        %428 = vmatpush2.bf16.msra.mxu0 0
        %429 = vmatprep.subr.bf16.mxu0 0
        %430 = vmatpush2.bf16.msra.mxu0 0
        %431 = vmatprep.mubr.bf16.mxu0 0
        %432 = vmatmul.mubr.bf16.gmra.mxu0 %v335
        %v433 = vpop.f32.mrf.mxu0
        %v434 = vadd.f32 0.0, %v433
        %v435 = vpop.f32.mrf.mxu0
        %v436 = vpop.f32.mrf.mxu0
        %v437 = vadd.f32 0.0, %v436
        %v438 = vpop.f32.mrf.mxu0
        %439 = vmatprep.mubr.bf16.mxu0 0
        %440 = vmatmul.mubr.bf16.gmra.mxu0 %v336
        %v441 = vpop.f32.mrf.mxu0
        %v442 = vadd.f32 0.0, %v441
        %v443 = vpop.f32.mrf.mxu0
        %v444 = vpop.f32.mrf.mxu0
        %v445 = vadd.f32 0.0, %v444
        %v446 = vpop.f32.mrf.mxu0
        %447 = vmatprep.mubr.bf16.mxu0 0
        %448 = vmatmul.mubr.bf16.gmra.mxu0 %v337
        %v449 = vpop.f32.mrf.mxu0
        %v450 = vadd.f32 0.0, %v449
        %v451 = vpop.f32.mrf.mxu0
        %v452 = vpop.f32.mrf.mxu0
        %v453 = vadd.f32 0.0, %v452
        %v454 = vpop.f32.mrf.mxu0
        %455 = vmatprep.mubr.bf16.mxu0 0
        %456 = vmatmul.mubr.bf16.gmra.mxu0 %v338
        %v457 = vpop.f32.mrf.mxu0
        %v458 = vadd.f32 0.0, %v457
        %v459 = vpop.f32.mrf.mxu0
        %v460 = vpop.f32.mrf.mxu0
        %v461 = vadd.f32 0.0, %v460
        %v462 = vpop.f32.mrf.mxu0
        %463 = vmatprep.mubr.bf16.mxu0 0
        %464 = vmatmul.mubr.bf16.gmra.mxu0 %v339
        %v465 = vpop.f32.mrf.mxu0
        %v466 = vadd.f32 0.0, %v465
        %v467 = vpop.f32.mrf.mxu0
        %v468 = vpop.f32.mrf.mxu0
        %v469 = vadd.f32 0.0, %v468
        %v470 = vpop.f32.mrf.mxu0
        %471 = vmatprep.mubr.bf16.mxu0 0
        %472 = vmatmul.mubr.bf16.gmra.mxu0 %v340
        %v473 = vpop.f32.mrf.mxu0
        %v474 = vadd.f32 0.0, %v473
        %v475 = vpop.f32.mrf.mxu0
        %v476 = vpop.f32.mrf.mxu0
        %v477 = vadd.f32 0.0, %v476
        %v478 = vpop.f32.mrf.mxu0
        %479 = vmatprep.mubr.bf16.mxu0 0
        %480 = vmatmul.mubr.bf16.gmra.mxu0 %v341
        %v481 = vpop.f32.mrf.mxu0
        %v482 = vadd.f32 0.0, %v481
        %v483 = vpop.f32.mrf.mxu0
        %v484 = vpop.f32.mrf.mxu0
        %v485 = vadd.f32 0.0, %v484
        %v486 = vpop.f32.mrf.mxu0
        %487 = vmatprep.mubr.bf16.mxu0 0
        %488 = vmatmul.mubr.bf16.gmra.mxu0 %v342
        %v489 = vpop.f32.mrf.mxu0
        %v490 = vadd.f32 0.0, %v489
        %v491 = vpop.f32.mrf.mxu0
        %v492 = vpop.f32.mrf.mxu0
        %v493 = vadd.f32 0.0, %v492
        %v494 = vpop.f32.mrf.mxu0
        %495 = vdwg.mxu0
        %v496 = vadd.f32 %v255, %v434
        %v497 = vadd.f32 %v256, %v437
        %v498 = vadd.f32 %v257, %v442
        %v499 = vadd.f32 %v258, %v445
        %v500 = vadd.f32 %v259, %v450
        %v501 = vadd.f32 %v260, %v453
        %v502 = vadd.f32 %v261, %v458
        %v503 = vadd.f32 %v262, %v461
        %v504 = vadd.f32 %v263, %v466
        %v505 = vadd.f32 %v264, %v469
        %v506 = vadd.f32 %v265, %v474
        %v507 = vadd.f32 %v266, %v477
        %v508 = vadd.f32 %v267, %v482
        %v509 = vadd.f32 %v268, %v485
        %v510 = vadd.f32 %v269, %v490
        %v511 = vadd.f32 %v270, %v493
        %512 = vst [vmem:[#allocation2] sm:$0xff] %v496
        %513 = vst [vmem:[#allocation2 + $0x8] sm:$0xff] %v497
        %514 = vst [vmem:[#allocation2 + $0x10] sm:$0xff] %v498
        %515 = vst [vmem:[#allocation2 + $0x18] sm:$0xff] %v499
        %516 = vst [vmem:[#allocation2 + $0x20] sm:$0xff] %v500
        %517 = vst [vmem:[#allocation2 + $0x28] sm:$0xff] %v501
        %518 = vst [vmem:[#allocation2 + $0x30] sm:$0xff] %v502
        %519 = vst [vmem:[#allocation2 + $0x38] sm:$0xff] %v503
        %520 = vst [vmem:[#allocation2 + $0x40] sm:$0xff] %v504
        %521 = vst [vmem:[#allocation2 + $0x48] sm:$0xff] %v505
        %522 = vst [vmem:[#allocation2 + $0x50] sm:$0xff] %v506
        %523 = vst [vmem:[#allocation2 + $0x58] sm:$0xff] %v507
        %524 = vst [vmem:[#allocation2 + $0x60] sm:$0xff] %v508
        %525 = vst [vmem:[#allocation2 + $0x68] sm:$0xff] %v509
        %526 = vst [vmem:[#allocation2 + $0x70] sm:$0xff] %v510
        %527 = vst [vmem:[#allocation2 + $0x78] sm:$0xff] %v511
        %p528 = scmp.eq.s32.totalorder %s29, 1
        // Predicated region
        $region41: #{tpu_custom_call.1} parent=27 // pred_check
          %p529 = pneg %p528
        $region42: #{tpu_custom_call.1} parent=27 // pred_check_branch
          %531 = sbr.rel (%p529) target = $region44
        $region43: #{tpu_custom_call.1} parent=27 // pred_region
          %v532 = vld [vmem:[#allocation2] sm:$0xff]
          %v533 = vld [vmem:[#allocation2 + $0x8] sm:$0xff]
          %v534 = vld [vmem:[#allocation2 + $0x10] sm:$0xff]
          %v535 = vld [vmem:[#allocation2 + $0x18] sm:$0xff]
          %v536 = vld [vmem:[#allocation2 + $0x20] sm:$0xff]
          %v537 = vld [vmem:[#allocation2 + $0x28] sm:$0xff]
          %v538 = vld [vmem:[#allocation2 + $0x30] sm:$0xff]
          %v539 = vld [vmem:[#allocation2 + $0x38] sm:$0xff]
          %v540 = vld [vmem:[#allocation2 + $0x40] sm:$0xff]
          %v541 = vld [vmem:[#allocation2 + $0x48] sm:$0xff]
          %v542 = vld [vmem:[#allocation2 + $0x50] sm:$0xff]
          %v543 = vld [vmem:[#allocation2 + $0x58] sm:$0xff]
          %v544 = vld [vmem:[#allocation2 + $0x60] sm:$0xff]
          %v545 = vld [vmem:[#allocation2 + $0x68] sm:$0xff]
          %v546 = vld [vmem:[#allocation2 + $0x70] sm:$0xff]
          %v547 = vld [vmem:[#allocation2 + $0x78] sm:$0xff]
          %v548 = vpack.c.bf16 %v533, %v532
          %v549 = vpack.c.bf16 %v535, %v534
          %v550 = vpack.c.bf16 %v537, %v536
          %v551 = vpack.c.bf16 %v539, %v538
          %v552 = vpack.c.bf16 %v541, %v540
          %v553 = vpack.c.bf16 %v543, %v542
          %v554 = vpack.c.bf16 %v545, %v544
          %v555 = vpack.c.bf16 %v547, %v546
          %v564 = vunpack.c.l.b16 %v548
          %v565 = vunpack.c.h.b16 %v548
          %v566 = vunpack.c.l.b16 %v549
          %v567 = vunpack.c.h.b16 %v549
          %v568 = vunpack.c.l.b16 %v550
          %v569 = vunpack.c.h.b16 %v550
          %v570 = vunpack.c.l.b16 %v551
          %v571 = vunpack.c.h.b16 %v551
          %v572 = vunpack.c.l.b16 %v552
          %v573 = vunpack.c.h.b16 %v552
          %v574 = vunpack.c.l.b16 %v553
          %v575 = vunpack.c.h.b16 %v553
          %v576 = vunpack.c.l.b16 %v554
          %v577 = vunpack.c.h.b16 %v554
          %v578 = vunpack.c.l.b16 %v555
          %v579 = vunpack.c.h.b16 %v555
          %v580 = vpack.c.b16 %v564, %v564
          %v581 = vpack.c.b16 %v565, %v565
          %v582 = vpack.c.b16 %v566, %v566
          %v583 = vpack.c.b16 %v567, %v567
          %v584 = vpack.c.b16 %v568, %v568
          %v585 = vpack.c.b16 %v569, %v569
          %v586 = vpack.c.b16 %v570, %v570
          %v587 = vpack.c.b16 %v571, %v571
          %v588 = vpack.c.b16 %v572, %v572
          %v589 = vpack.c.b16 %v573, %v573
          %v590 = vpack.c.b16 %v574, %v574
          %v591 = vpack.c.b16 %v575, %v575
          %v592 = vpack.c.b16 %v576, %v576
          %v593 = vpack.c.b16 %v577, %v577
          %v594 = vpack.c.b16 %v578, %v578
          %v595 = vpack.c.b16 %v579, %v579
          %612 = vst [vmem:[%s230] sm:$0xf] %v580
          %613 = vst [vmem:[%s230 + $0x4] sm:$0xf] %v581
          %614 = vst [vmem:[%s230 + $0x8] sm:$0xf] %v582
          %615 = vst [vmem:[%s230 + $0xc] sm:$0xf] %v583
          %616 = vst [vmem:[%s230 + $0x10] sm:$0xf] %v584
          %617 = vst [vmem:[%s230 + $0x14] sm:$0xf] %v585
          %618 = vst [vmem:[%s230 + $0x18] sm:$0xf] %v586
          %619 = vst [vmem:[%s230 + $0x1c] sm:$0xf] %v587
          %620 = vst [vmem:[%s230 + $0x20] sm:$0xf] %v588
          %621 = vst [vmem:[%s230 + $0x24] sm:$0xf] %v589
          %622 = vst [vmem:[%s230 + $0x28] sm:$0xf] %v590
          %623 = vst [vmem:[%s230 + $0x2c] sm:$0xf] %v591
          %624 = vst [vmem:[%s230 + $0x30] sm:$0xf] %v592
          %625 = vst [vmem:[%s230 + $0x34] sm:$0xf] %v593
          %626 = vst [vmem:[%s230 + $0x38] sm:$0xf] %v594
          %627 = vst [vmem:[%s230 + $0x3c] sm:$0xf] %v595
        $region44: #{tpu_custom_call.1} parent=27 // pred_fallthru
          _
        %s628 = sand.u32 %s107, 1
        %s629 = scalar_lea.sflag [#allocation5], %s628
        %s630 = sand.u32 %s107, 1
        %s631 = smul.addr %s630, 64
        %s632 = scalar_lea.vmem [#allocation8], %s631
        // Predicated region
        $region45: #{tpu_custom_call.1} parent=27 // pred_check
          %p633 = pneg %p117
        $region46: #{tpu_custom_call.1} parent=27 // pred_check_branch
          %635 = sbr.rel (%p633) target = $region48
        $region47: #{tpu_custom_call.1} parent=27 // pred_region
          %s636 = smul.u32 16, %s27
          %s638 = ssub.s32 1024, 1024
          %639 = vsyncadd %s629, %s638
          %s640 = smul.addr %s636, 4
          %s641 = sadd.s32 %s28, %s640
          %s642 = smul.addr %s641, 64
          %s643 = scalar_lea.hbm %s2, %s642
          %s644 = sshll.u32 %s632, 4
          %s645 = int_to_ptr.vmem [resolvable:$true] %s644
          %650 = dma.vmem_to_hbm [thread:$0]  %s645, 1024, %s643, %s629, 64, 256, 4
        $region48: #{tpu_custom_call.1} parent=27 // pred_fallthru
          _
      $region28: #{tpu_custom_call.1} parent=5 // pred_fallthru
        _
      %p651 = scmp.le.s32.totalorder 2, %s17
      // Predicated region
      $region49: #{tpu_custom_call.1} parent=5 // pred_check
        %p652 = pneg %p651
      $region50: #{tpu_custom_call.1} parent=5 // pred_check_branch
        %654 = sbr.rel (%p652) target = $region52
      $region51: #{tpu_custom_call.1} parent=5 // pred_region
        %s655 = ssub.s32 %s17, 2
        // Predicated region
        $region53: #{tpu_custom_call.1} parent=51 // pred_check
          %p656 = pneg %p123
        $region54: #{tpu_custom_call.1} parent=51 // pred_check_branch
          %658 = sbr.rel (%p656) target = $region56
        $region55: #{tpu_custom_call.1} parent=51 // pred_region
          %s659 = sand.u32 %s108, 1
          %s660 = scalar_lea.sflag [#allocation5], %s659
          %s661 = sand.u32 %s108, 1
          %s662 = smul.addr %s661, 64
          %s663 = scalar_lea.vmem [#allocation8], %s662
          %664 = dma.done %s660, 1024
        $region56: #{tpu_custom_call.1} parent=51 // pred_fallthru
          _
      $region52: #{tpu_custom_call.1} parent=5 // pred_fallthru
        _
    $region6: #{tpu_custom_call.1} parent=1 // loop_footer
      %s21 = sadd.s32 1, %s17
    $region7: #{tpu_custom_call.1} parent=1 // loop_footer_branch
      %16 = sbr.rel target = $region3
    $region8: #{tpu_custom_call.1} parent=1 // loop_exit
      _
    %665 = vsyncpa [#allocation4], 1
    %s666 = scalar_lea.sflag [#allocation4], 1
    %667 = vsyncpa %s666, 1
    %668 = vsyncpa [#allocation7], 1
    %s669 = scalar_lea.sflag [#allocation7], 1
    %670 = vsyncpa %s669, 1
    %671 = vsyncpa [#allocation5], 1
    %s672 = scalar_lea.sflag [#allocation5], 1
    %673 = vsyncpa %s672, 1

</llo_original>
